<compile_context>
chip_gen: v5e
topology: v5e:2x2
jax: 0.10.0
libtpu: 0.0.40
codegen_flags: <defaults>
</compile_context>

<pallas_src>
import numpy as np

import jax
import jax.numpy as jnp
from jax import lax
from jax.experimental import pallas as pl
from jax.experimental.pallas import tpu as pltpu

# ----------------------------- model hyper-params -----------------------------
VOCAB_SIZE = 50
EMBED_DIM = 32
N_CLASSES = 4
N_FILTERS = 8
FILTER_SIZES = (2, 3, 4)
DROPOUT = 0.1          # inference semantics: dropout == identity
PAD_IDX = 0

BATCH = 2
SEQ = 8

FS_MAX = max(FILTER_SIZES)                  # 4
N_FS = len(FILTER_SIZES)                    # 3
NOUT = N_FS * N_FILTERS                     # 24 packed conv channels
VPAD = 64                                   # vocab padded to 64 => one-hot block per tap
LPAD = SEQ                                  # window rows padded to SEQ so flat window row
                                            # index == flat token index (key for the shift)
RTOT = BATCH * LPAD                         # 16 rows into the fused matmul
KTOT = FS_MAX * VPAD                        # 256 = one K pass on a 256-wide MXU
IDS_PAD_LEN = 24                            # >= BATCH*SEQ + FS_MAX - 1, sublane multiple

assert VOCAB_SIZE <= VPAD
assert LPAD >= SEQ - min(FILTER_SIZES) + 1
assert IDS_PAD_LEN >= BATCH * SEQ + FS_MAX - 1


# --------------------------------- kernel ------------------------------------
def _cnn_kernel(ids_ref, gw_ref, bpack_ref, mask_ref, fcw_ref, fcb_ref, out_ref):
    """Fused embedding + text-CNN (all filter sizes) + ReLU + max-pool + FC.

    ids_ref   : [IDS_PAD_LEN, 1]  int32  flat padded token ids (VMEM)
    gw_ref    : [KTOT, NOUT]      bf16   GW[i*VPAD+v] = emb[v] @ wpack[i*E:(i+1)*E]
    bpack_ref : [1, NOUT]         f32    packed conv biases
    mask_ref  : [RTOT, NOUT]      f32    static valid-window mask (1 valid / 0 invalid)
    fcw_ref   : [NOUT, C]         f32    FC weight, pre-transposed
    fcb_ref   : [1, C]            f32
    out_ref   : [B, C]            f32
    """
    # 1) Shifted one-hot: onehot[r, i*VPAD + v] = 1 iff ids_flat[r + i] == v.
    #    (r = b*LPAD + l, so for valid windows r+i indexes ids[b, l+i]; rows that bleed
    #     past the sequence / batch boundary are finite and killed by mask_ref.)
    ids_all = ids_ref[...]                                       # [IDS_PAD_LEN, 1]
    col = lax.broadcasted_iota(jnp.int32, (RTOT, KTOT), 1)       # column index 0..255
    hit = ids_all[0:RTOT, :] == col                              # tap 0
    for i in range(1, FS_MAX):
        hit = hit | ((ids_all[i:i + RTOT, :] + i * VPAD) == col)
    onehot = jnp.where(hit, 1.0, 0.0).astype(jnp.bfloat16)       # [RTOT, KTOT]

    # 2) ONE MXU matmul = embedding gather + im2col + conv for every filter size.
    conv = jnp.dot(onehot, gw_ref[...],
                   preferred_element_type=jnp.float32)           # [RTOT, NOUT]

    # 3) Bias + ReLU fused; static mask zeroes invalid windows (ReLU >= 0, so 0 never
    #    wins the max wrongly); max-pool over time per batch slab.
    act = jnp.maximum(conv + bpack_ref[...], 0.0) * mask_ref[...]
    pooled = [jnp.max(act[b * LPAD:(b + 1) * LPAD, :], axis=0, keepdims=True)
              for b in range(BATCH)]
    feats = jnp.concatenate(pooled, axis=0)                      # [B, NOUT]

    # 4) FC head (dropout is identity at inference time).
    out_ref[...] = (
        jnp.dot(feats, fcw_ref[...], preferred_element_type=jnp.float32) + fcb_ref[...]
    )


@jax.jit
def basic_cnn_forward(input_ids, packed):
    """input_ids: [B, S] int32 -> logits [B, C] f32 (single fused pallas_call)."""
    ids_flat = input_ids.reshape(-1).astype(jnp.int32)
    ids_pad = jnp.pad(ids_flat, (0, IDS_PAD_LEN - BATCH * SEQ)).reshape(IDS_PAD_LEN, 1)
    vmem = pl.BlockSpec(memory_space=pltpu.MemorySpace.VMEM)
    return pl.pallas_call(
        _cnn_kernel,
        out_shape=jax.ShapeDtypeStruct((BATCH, N_CLASSES), jnp.float32),
        in_specs=[vmem] * 6,
        out_specs=vmem,
    )(ids_pad, packed["gw"], packed["bpack"], packed["mask"],
      packed["fc_w_t"], packed["fc_b"])


# ---------------------------- parameter creation ------------------------------
def init_params(key):
    keys = jax.random.split(key, 3 + 2 * len(FILTER_SIZES))
    params = {}
    emb = jax.random.normal(keys[0], (VOCAB_SIZE, EMBED_DIM), jnp.float32) * 0.1
    emb = emb.at[PAD_IDX].set(0.0)  # padding_idx => zero row
    params["embedding"] = emb
    for i, fs in enumerate(FILTER_SIZES):
        kw, kb = keys[1 + 2 * i], keys[2 + 2 * i]
        # torch Conv2d weight is [F, 1, fs, E]; stored here as [fs, E, F]
        params[f"conv{fs}_w"] = (
            jax.random.normal(kw, (fs, EMBED_DIM, N_FILTERS), jnp.float32) * 0.1
        )
        params[f"conv{fs}_b"] = jax.random.normal(kb, (N_FILTERS,), jnp.float32) * 0.1
    kf = keys[1 + 2 * len(FILTER_SIZES)]
    params["fc_w"] = (
        jax.random.normal(kf, (N_CLASSES, len(FILTER_SIZES) * N_FILTERS), jnp.float32)
        * 0.1
    )
    params["fc_b"] = (
        jax.random.normal(keys[2 + 2 * len(FILTER_SIZES)], (N_CLASSES,), jnp.float32)
        * 0.1
    )
    return params


def pack_params(params):
    """One-time packing: fold embedding into the conv weights (inference-only) and bake
    the static valid-window mask as a constant input."""
    E, F = EMBED_DIM, N_FILTERS

    # Packed conv weights [FS_MAX*E, NOUT] with zero rows for taps >= fs of each group.
    wpack = np.zeros((FS_MAX * E, NOUT), np.float64)
    bpack = np.zeros((1, NOUT), np.float32)
    for j, fs in enumerate(FILTER_SIZES):
        w = np.asarray(params[f"conv{fs}_w"], np.float64)        # [fs, E, F]
        wpack[: fs * E, j * F:(j + 1) * F] = w.reshape(fs * E, F)
        bpack[0, j * F:(j + 1) * F] = np.asarray(params[f"conv{fs}_b"])

    # GW[i*VPAD + v, :] = emb[v] @ wpack[i*E:(i+1)*E, :]  (padded vocab rows stay zero).
    emb = np.asarray(params["embedding"], np.float64)            # [V, E]
    gw = np.zeros((KTOT, NOUT), np.float64)
    for i in range(FS_MAX):
        gw[i * VPAD: i * VPAD + VOCAB_SIZE, :] = emb @ wpack[i * E:(i + 1) * E, :]

    # Static valid-window mask: window l of group fs is valid iff l < SEQ - fs + 1.
    mask = np.zeros((RTOT, NOUT), np.float32)
    for b in range(BATCH):
        for j, fs in enumerate(FILTER_SIZES):
            L = SEQ - fs + 1
            mask[b * LPAD: b * LPAD + L, j * F:(j + 1) * F] = 1.0

    return {
        "gw": jnp.asarray(gw, jnp.bfloat16),                     # bf16: single MXU pass
        "bpack": jnp.asarray(bpack),
        "mask": jnp.asarray(mask),
        "fc_w_t": jnp.asarray(np.asarray(params["fc_w"], np.float32).T),  # [NOUT, C]
        "fc_b": jnp.asarray(np.asarray(params["fc_b"], np.float32).reshape(1, -1)),
    }


# ------------------------------ pure-JAX reference ----------------------------
def reference_forward(input_ids, params):
    embed = params["embedding"][input_ids]  # [B, S, E]
    pooled = []
    for fs in FILTER_SIZES:
        w = params[f"conv{fs}_w"]  # [fs, E, F]
        b = params[f"conv{fs}_b"]
        L = SEQ - fs + 1
        acc = jnp.zeros((BATCH, L, N_FILTERS), jnp.float32)
        for i in range(fs):
            acc = acc + jnp.einsum("ble,ef->blf", embed[:, i: i + L, :], w[i])
        acc = jnp.maximum(acc + b, 0.0)
        pooled.append(jnp.max(acc, axis=1))
    cat = jnp.concatenate(pooled, axis=1)
    return cat @ params["fc_w"].T + params["fc_b"]


# ----------------------------------- main -------------------------------------
if __name__ == "__main__":
    key = jax.random.PRNGKey(0)
    k_ids, k_params = jax.random.split(key)
    input_ids = jax.random.randint(k_ids, (BATCH, SEQ), 0, VOCAB_SIZE, dtype=jnp.int32)
    params = init_params(k_params)
    packed = pack_params(params)

    out = basic_cnn_forward(input_ids, packed)
    out = jax.block_until_ready(out)

    ref = reference_forward(input_ids, params)
    np.testing.assert_allclose(np.asarray(out), np.asarray(ref), rtol=1e-2, atol=1e-2)

    print("KERNEL_OK")
</pallas_src>

<mosaic_0001>
module attributes {stable_mosaic.version = 11 : i64} {
  func.func @_cnn_kernel(%arg0: memref<24x1xi32, #tpu.memory_space<vmem>>, %arg1: memref<256x24xbf16, #tpu.memory_space<vmem>>, %arg2: memref<1x24xf32, #tpu.memory_space<vmem>>, %arg3: memref<16x24xf32, #tpu.memory_space<vmem>>, %arg4: memref<24x4xf32, #tpu.memory_space<vmem>>, %arg5: memref<1x4xf32, #tpu.memory_space<vmem>>, %arg6: memref<2x4xf32, #tpu.memory_space<vmem>>) attributes {dimension_semantics = [], scalar_prefetch = 0 : i64, scratch_operands = 0 : i64, tpu.core_type = #tpu.core_type<tc>} {
    %c0 = arith.constant 0 : index
    %c0_0 = arith.constant 0 : index
    %0 = vector.load %arg0[%c0, %c0_0] : memref<24x1xi32, #tpu.memory_space<vmem>>, vector<24x1xi32>
    %1 = tpu.iota {dimensions = array<i32: 1>} : vector<16x256xi32>
    %2 = vector.extract_strided_slice %0 {offsets = [0, 0], sizes = [16, 1], strides = [1, 1]} : vector<24x1xi32> to vector<16x1xi32>
    %3 = vector.broadcast %2 : vector<16x1xi32> to vector<16x256xi32>
    %4 = arith.cmpi eq, %3, %1 : vector<16x256xi32>
    %5 = vector.extract_strided_slice %0 {offsets = [1, 0], sizes = [16, 1], strides = [1, 1]} : vector<24x1xi32> to vector<16x1xi32>
    %c64_i32 = arith.constant 64 : i32
    %6 = vector.broadcast %c64_i32 : i32 to vector<16x1xi32>
    %7 = arith.addi %5, %6 : vector<16x1xi32>
    %8 = vector.broadcast %7 : vector<16x1xi32> to vector<16x256xi32>
    %9 = arith.cmpi eq, %8, %1 : vector<16x256xi32>
    %10 = arith.ori %4, %9 : vector<16x256xi1>
    %11 = vector.extract_strided_slice %0 {offsets = [2, 0], sizes = [16, 1], strides = [1, 1]} : vector<24x1xi32> to vector<16x1xi32>
    %c128_i32 = arith.constant 128 : i32
    %12 = vector.broadcast %c128_i32 : i32 to vector<16x1xi32>
    %13 = arith.addi %11, %12 : vector<16x1xi32>
    %14 = vector.broadcast %13 : vector<16x1xi32> to vector<16x256xi32>
    %15 = arith.cmpi eq, %14, %1 : vector<16x256xi32>
    %16 = arith.ori %10, %15 : vector<16x256xi1>
    %17 = vector.extract_strided_slice %0 {offsets = [3, 0], sizes = [16, 1], strides = [1, 1]} : vector<24x1xi32> to vector<16x1xi32>
    %c192_i32 = arith.constant 192 : i32
    %18 = vector.broadcast %c192_i32 : i32 to vector<16x1xi32>
    %19 = arith.addi %17, %18 : vector<16x1xi32>
    %20 = vector.broadcast %19 : vector<16x1xi32> to vector<16x256xi32>
    %21 = arith.cmpi eq, %20, %1 : vector<16x256xi32>
    %22 = arith.ori %16, %21 : vector<16x256xi1>
    %cst = arith.constant 1.000000e+00 : f32
    %cst_1 = arith.constant 0.000000e+00 : f32
    %23 = vector.broadcast %cst : f32 to vector<16x256xf32>
    %24 = vector.broadcast %cst_1 : f32 to vector<16x256xf32>
    %25 = arith.select %22, %23, %24 : vector<16x256xi1>, vector<16x256xf32>
    %26 = arith.truncf %25 : vector<16x256xf32> to vector<16x256xbf16>
    %c0_2 = arith.constant 0 : index
    %c0_3 = arith.constant 0 : index
    %27 = vector.load %arg1[%c0_2, %c0_3] : memref<256x24xbf16, #tpu.memory_space<vmem>>, vector<256x24xbf16>
    %cst_4 = arith.constant dense<0.000000e+00> : vector<16x24xf32>
    %28 = tpu.matmul %26, %27, %cst_4 {dimension_numbers = #tpu.dot_dimension_numbers<[1], [0], [0], [1], [0, 0, 1, 1], [], []>} : vector<16x256xbf16>, vector<256x24xbf16>, vector<16x24xf32> -> vector<16x24xf32>
    %c0_5 = arith.constant 0 : index
    %c0_6 = arith.constant 0 : index
    %29 = vector.load %arg2[%c0_5, %c0_6] : memref<1x24xf32, #tpu.memory_space<vmem>>, vector<1x24xf32>
    %30 = vector.broadcast %29 : vector<1x24xf32> to vector<16x24xf32>
    %31 = arith.addf %28, %30 : vector<16x24xf32>
    %cst_7 = arith.constant 0.000000e+00 : f32
    %32 = vector.broadcast %cst_7 : f32 to vector<16x24xf32>
    %33 = arith.maximumf %31, %32 : vector<16x24xf32>
    %c0_8 = arith.constant 0 : index
    %c0_9 = arith.constant 0 : index
    %34 = vector.load %arg3[%c0_8, %c0_9] : memref<16x24xf32, #tpu.memory_space<vmem>>, vector<16x24xf32>
    %35 = arith.mulf %33, %34 : vector<16x24xf32>
    %36 = vector.extract_strided_slice %35 {offsets = [0, 0], sizes = [8, 24], strides = [1, 1]} : vector<16x24xf32> to vector<8x24xf32>
    %cst_10 = arith.constant dense<0xFF800000> : vector<24xf32>
    %37 = vector.multi_reduction <maximumf>, %36, %cst_10 [0] : vector<8x24xf32> to vector<24xf32>
    %38 = vector.shape_cast %37 : vector<24xf32> to vector<1x24xf32>
    %39 = vector.extract_strided_slice %35 {offsets = [8, 0], sizes = [8, 24], strides = [1, 1]} : vector<16x24xf32> to vector<8x24xf32>
    %cst_11 = arith.constant dense<0xFF800000> : vector<24xf32>
    %40 = vector.multi_reduction <maximumf>, %39, %cst_11 [0] : vector<8x24xf32> to vector<24xf32>
    %41 = vector.shape_cast %40 : vector<24xf32> to vector<1x24xf32>
    %42 = tpu.concatenate %38, %41 in 0 : vector<1x24xf32>, vector<1x24xf32> -> vector<2x24xf32>
    %c0_12 = arith.constant 0 : index
    %c0_13 = arith.constant 0 : index
    %43 = vector.load %arg4[%c0_12, %c0_13] : memref<24x4xf32, #tpu.memory_space<vmem>>, vector<24x4xf32>
    %cst_14 = arith.constant dense<0.000000e+00> : vector<2x4xf32>
    %44 = tpu.matmul %42, %43, %cst_14 {dimension_numbers = #tpu.dot_dimension_numbers<[1], [0], [0], [1], [0, 0, 1, 1], [], []>} : vector<2x24xf32>, vector<24x4xf32>, vector<2x4xf32> -> vector<2x4xf32>
    %c0_15 = arith.constant 0 : index
    %c0_16 = arith.constant 0 : index
    %45 = vector.load %arg5[%c0_15, %c0_16] : memref<1x4xf32, #tpu.memory_space<vmem>>, vector<1x4xf32>
    %46 = vector.broadcast %45 : vector<1x4xf32> to vector<2x4xf32>
    %47 = arith.addf %44, %46 : vector<2x4xf32>
    %c0_17 = arith.constant 0 : index
    %c0_18 = arith.constant 0 : index
    %48 = vector.load %arg6[%c0_17, %c0_18] : memref<2x4xf32, #tpu.memory_space<vmem>>, vector<2x4xf32>
    tpu.vector_store %arg6[%c0_17, %c0_18], %47 {strides = array<i32>} : memref<2x4xf32, #tpu.memory_space<vmem>>, vector<2x4xf32>,
    return
  }
}

</mosaic_0001>

<llo_original>
// kernel: basic_cnn_forward.1
$region0: #{basic_cnn_forward.1}
  #allocation0 [shape = 'u32[]', space=smem, size = 0x4, offset = 0x4, fixed_abs, tag = 'smem constant byte address 0x4 - core index']
  #allocation1 [shape = 'u32[72,128]{1,0:T(1,128)}', space=vmem, size = 0x9000, scoped, tag = 'internal scratch']
  %s0 = inlined_call_operand.vmem [shape: s32[24,1], index: 0, kind: input, shape index: {}]
  %s1 = inlined_call_operand.vmem [shape: bf16[256,24], index: 1, kind: input, shape index: {}]
  %s2 = inlined_call_operand.vmem [shape: f32[1,24], index: 2, kind: input, shape index: {}]
  %s3 = inlined_call_operand.vmem [shape: f32[16,24], index: 3, kind: input, shape index: {}]
  %s4 = inlined_call_operand.vmem [shape: f32[24,4], index: 4, kind: input, shape index: {}]
  %s5 = inlined_call_operand.vmem [shape: f32[1,4], index: 5, kind: input, shape index: {}]
  %s6 = inlined_call_operand.hbm [shape: f32[2,4], index: 6, kind: output, shape index: {}]
  %s7 = sld [smem:[#allocation0]]
  $region34: #{basic_cnn_forward.1} parent=0
    _
  %s9 = ssub.s32 1, %s7
  %s10 = scalar_select 0, %s9, %s7
  $region1: #{basic_cnn_forward.1} parent=0
    #allocation2 [shape = 'u8[1024]{0}', space=vmem, size = 0x400, scoped, tag = 'output window, operand 0, single buffered']
    #allocation3 [shape = 's32[1]{0}', space=sflag, size = 0x4, scoped, tag = 'scoped memory for basic_cnn_forward.1']
    %11 = vsyncpa [#allocation3], 0
    // Predicated region
    $region2: #{basic_cnn_forward.1} parent=1 // pred_check
      _
    $region3: #{basic_cnn_forward.1} parent=1 // pred_check_branch
      %13 = sbr.rel (0) target = $region5
    $region4: #{basic_cnn_forward.1} parent=1 // pred_region
      _
    $region5: #{basic_cnn_forward.1} parent=1 // pred_fallthru
      _
    // Predicated region
    $region6: #{basic_cnn_forward.1} parent=1 // pred_check
      _
    $region7: #{basic_cnn_forward.1} parent=1 // pred_check_branch
      %15 = sbr.rel (0) target = $region9
    $region8: #{basic_cnn_forward.1} parent=1 // pred_region
      _
    $region9: #{basic_cnn_forward.1} parent=1 // pred_fallthru
      _
    // Predicated region
    $region10: #{basic_cnn_forward.1} parent=1 // pred_check
      _
    $region11: #{basic_cnn_forward.1} parent=1 // pred_check_branch
      %17 = sbr.rel (0) target = $region13
    $region12: #{basic_cnn_forward.1} parent=1 // pred_region
      _
    $region13: #{basic_cnn_forward.1} parent=1 // pred_fallthru
      _
    // Predicated region
    $region14: #{basic_cnn_forward.1} parent=1 // pred_check
      _
    $region15: #{basic_cnn_forward.1} parent=1 // pred_check_branch
      %19 = sbr.rel (0) target = $region17
    $region16: #{basic_cnn_forward.1} parent=1 // pred_region
      _
    $region17: #{basic_cnn_forward.1} parent=1 // pred_fallthru
      _
    // Predicated region
    $region18: #{basic_cnn_forward.1} parent=1 // pred_check
      _
    $region19: #{basic_cnn_forward.1} parent=1 // pred_check_branch
      %21 = sbr.rel (0) target = $region21
    $region20: #{basic_cnn_forward.1} parent=1 // pred_region
      _
    $region21: #{basic_cnn_forward.1} parent=1 // pred_fallthru
      _
    // Predicated region
    $region22: #{basic_cnn_forward.1} parent=1 // pred_check
      _
    $region23: #{basic_cnn_forward.1} parent=1 // pred_check_branch
      %23 = sbr.rel (0) target = $region25
    $region24: #{basic_cnn_forward.1} parent=1 // pred_region
      _
    $region25: #{basic_cnn_forward.1} parent=1 // pred_fallthru
      _
    %v24 = vld [vmem:[%s0] sm:$0xff]
    %v25 = vld [vmem:[%s0 + $0x8] sm:$0xff]
    %v26 = vld [vmem:[%s0 + $0x10] sm:$0xff]
    %v27 = vlaneseq
    %v28 = vand.u32 %v27, 127
    %v29 = vadd.s32 %v28, 128
    %30 = vset.pattern.permute.xlu0 0
    %31 = vperm.xlu0 %30, %v24
    %v32 = vpop.permute.xlu0 %31
    %33 = vset.pattern.permute.xlu0 0
    %34 = vperm.xlu0 %33, %v25
    %v35 = vpop.permute.xlu0 %34
    %vm36 = vcmp.eq.s32.totalorder %v32, %v28
    %vm37 = vcmp.eq.s32.totalorder %v32, %v29
    %vm38 = vcmp.eq.s32.totalorder %v35, %v28
    %vm39 = vcmp.eq.s32.totalorder %v35, %v29
    %v40 = vadd.s32 %v24, 64
    %v41 = vadd.s32 %v25, 64
    %v42 = vadd.s32 %v26, 64
    %43 = vset.pattern.permute.xlu0 0
    %44 = vperm.xlu0 %43, %v40
    %v45 = vpop.permute.xlu0 %44
    %46 = vset.pattern.permute.xlu0 0
    %47 = vperm.xlu0 %46, %v41
    %v48 = vpop.permute.xlu0 %47
    %49 = vset.pattern.permute.xlu0 0
    %50 = vperm.xlu0 %49, %v42
    %v51 = vpop.permute.xlu0 %50
    %vm52 = vcmp.eq.s32.totalorder %v45, %v28
    %vm53 = vcmp.eq.s32.totalorder %v45, %v29
    %vm54 = vcmp.eq.s32.totalorder %v48, %v28
    %vm55 = vcmp.eq.s32.totalorder %v48, %v29
    %vm56 = vcmp.eq.s32.totalorder %v51, %v28
    %vm57 = vcmp.eq.s32.totalorder %v51, %v29
    %v58 = vsel %vm52, 1, 0
    %v59 = vsel %vm53, 1, 0
    %v60 = vsel %vm54, 1, 0
    %v61 = vsel %vm55, 1, 0
    %v62 = vsel %vm56, 1, 0
    %v63 = vsel %vm57, 1, 0
    %vm64 = vcmask 1046528
    %v65 = vrot.slane %v58, 1
    %v66 = vrot.slane %v60, 1
    %v67 = vsel %vm64, %v65, %v66
    %v68 = vrot.slane %v59, 1
    %v69 = vrot.slane %v61, 1
    %v70 = vsel %vm64, %v68, %v69
    %v71 = vrot.slane %v62, 1
    %v72 = vsel %vm64, %v66, %v71
    %v73 = vrot.slane %v63, 1
    %v74 = vsel %vm64, %v69, %v73
    %vm75 = vcmp.ne.s32.totalorder %v67, 0
    %vm76 = vcmp.ne.s32.totalorder %v70, 0
    %vm77 = vcmp.ne.s32.totalorder %v72, 0
    %vm78 = vcmp.ne.s32.totalorder %v74, 0
    %vm79 = vmor %vm36, %vm75
    %vm80 = vmor %vm37, %vm76
    %vm81 = vmor %vm38, %vm77
    %vm82 = vmor %vm39, %vm78
    %v83 = vadd.s32 %v24, 128
    %v84 = vadd.s32 %v25, 128
    %v85 = vadd.s32 %v26, 128
    %86 = vset.pattern.permute.xlu0 0
    %87 = vperm.xlu0 %86, %v83
    %v88 = vpop.permute.xlu0 %87
    %89 = vset.pattern.permute.xlu0 0
    %90 = vperm.xlu0 %89, %v84
    %v91 = vpop.permute.xlu0 %90
    %92 = vset.pattern.permute.xlu0 0
    %93 = vperm.xlu0 %92, %v85
    %v94 = vpop.permute.xlu0 %93
    %vm95 = vcmp.eq.s32.totalorder %v88, %v28
    %vm96 = vcmp.eq.s32.totalorder %v88, %v29
    %vm97 = vcmp.eq.s32.totalorder %v91, %v28
    %vm98 = vcmp.eq.s32.totalorder %v91, %v29
    %vm99 = vcmp.eq.s32.totalorder %v94, %v28
    %vm100 = vcmp.eq.s32.totalorder %v94, %v29
    %v101 = vsel %vm95, 1, 0
    %v102 = vsel %vm96, 1, 0
    %v103 = vsel %vm97, 1, 0
    %v104 = vsel %vm98, 1, 0
    %v105 = vsel %vm99, 1, 0
    %v106 = vsel %vm100, 1, 0
    %vm107 = vcmask 1045504
    %v108 = vrot.slane %v101, 2
    %v109 = vrot.slane %v103, 2
    %v110 = vsel %vm107, %v108, %v109
    %v111 = vrot.slane %v102, 2
    %v112 = vrot.slane %v104, 2
    %v113 = vsel %vm107, %v111, %v112
    %v114 = vrot.slane %v105, 2
    %v115 = vsel %vm107, %v109, %v114
    %v116 = vrot.slane %v106, 2
    %v117 = vsel %vm107, %v112, %v116
    %vm118 = vcmp.ne.s32.totalorder %v110, 0
    %vm119 = vcmp.ne.s32.totalorder %v113, 0
    %vm120 = vcmp.ne.s32.totalorder %v115, 0
    %vm121 = vcmp.ne.s32.totalorder %v117, 0
    %vm122 = vmor %vm79, %vm118
    %vm123 = vmor %vm80, %vm119
    %vm124 = vmor %vm81, %vm120
    %vm125 = vmor %vm82, %vm121
    %v126 = vadd.s32 %v24, 192
    %v127 = vadd.s32 %v25, 192
    %v128 = vadd.s32 %v26, 192
    %129 = vset.pattern.permute.xlu0 0
    %130 = vperm.xlu0 %129, %v126
    %v131 = vpop.permute.xlu0 %130
    %132 = vset.pattern.permute.xlu0 0
    %133 = vperm.xlu0 %132, %v127
    %v134 = vpop.permute.xlu0 %133
    %135 = vset.pattern.permute.xlu0 0
    %136 = vperm.xlu0 %135, %v128
    %v137 = vpop.permute.xlu0 %136
    %vm138 = vcmp.eq.s32.totalorder %v131, %v28
    %vm139 = vcmp.eq.s32.totalorder %v131, %v29
    %vm140 = vcmp.eq.s32.totalorder %v134, %v28
    %vm141 = vcmp.eq.s32.totalorder %v134, %v29
    %vm142 = vcmp.eq.s32.totalorder %v137, %v28
    %vm143 = vcmp.eq.s32.totalorder %v137, %v29
    %v144 = vsel %vm138, 1, 0
    %v145 = vsel %vm139, 1, 0
    %v146 = vsel %vm140, 1, 0
    %v147 = vsel %vm141, 1, 0
    %v148 = vsel %vm142, 1, 0
    %v149 = vsel %vm143, 1, 0
    %vm150 = vcmask 1044480
    %v151 = vrot.slane %v144, 3
    %v152 = vrot.slane %v146, 3
    %v153 = vsel %vm150, %v151, %v152
    %v154 = vrot.slane %v145, 3
    %v155 = vrot.slane %v147, 3
    %v156 = vsel %vm150, %v154, %v155
    %v157 = vrot.slane %v148, 3
    %v158 = vsel %vm150, %v152, %v157
    %v159 = vrot.slane %v149, 3
    %v160 = vsel %vm150, %v155, %v159
    %vm161 = vcmp.ne.s32.totalorder %v153, 0
    %vm162 = vcmp.ne.s32.totalorder %v156, 0
    %vm163 = vcmp.ne.s32.totalorder %v158, 0
    %vm164 = vcmp.ne.s32.totalorder %v160, 0
    %vm165 = vmor %vm122, %vm161
    %vm166 = vmor %vm123, %vm162
    %vm167 = vmor %vm124, %vm163
    %vm168 = vmor %vm125, %vm164
    %v169 = vsel %vm165, 1.0, 0.0
    %v170 = vsel %vm166, 1.0, 0.0
    %v171 = vsel %vm167, 1.0, 0.0
    %v172 = vsel %vm168, 1.0, 0.0
    %v173 = vpack.c.bf16 %v171, %v169
    %v174 = vpack.c.bf16 %v172, %v170
    %v175 = vld [vmem:[%s1] sm:$0xf]
    %v176 = vld [vmem:[%s1 + $0x4] sm:$0xf]
    %v177 = vld [vmem:[%s1 + $0x8] sm:$0xf]
    %v178 = vld [vmem:[%s1 + $0xc] sm:$0xf]
    %v179 = vld [vmem:[%s1 + $0x10] sm:$0xf]
    %v180 = vld [vmem:[%s1 + $0x14] sm:$0xf]
    %v181 = vld [vmem:[%s1 + $0x18] sm:$0xf]
    %v182 = vld [vmem:[%s1 + $0x1c] sm:$0xf]
    %v183 = vld [vmem:[%s1 + $0x20] sm:$0xf]
    %v184 = vld [vmem:[%s1 + $0x24] sm:$0xf]
    %v185 = vld [vmem:[%s1 + $0x28] sm:$0xf]
    %v186 = vld [vmem:[%s1 + $0x2c] sm:$0xf]
    %v187 = vld [vmem:[%s1 + $0x30] sm:$0xf]
    %v188 = vld [vmem:[%s1 + $0x34] sm:$0xf]
    %v189 = vld [vmem:[%s1 + $0x38] sm:$0xf]
    %v190 = vld [vmem:[%s1 + $0x3c] sm:$0xf]
    %v191 = vld [vmem:[%s1 + $0x40] sm:$0xf]
    %v192 = vld [vmem:[%s1 + $0x44] sm:$0xf]
    %v193 = vld [vmem:[%s1 + $0x48] sm:$0xf]
    %v194 = vld [vmem:[%s1 + $0x4c] sm:$0xf]
    %v195 = vld [vmem:[%s1 + $0x50] sm:$0xf]
    %v196 = vld [vmem:[%s1 + $0x54] sm:$0xf]
    %v197 = vld [vmem:[%s1 + $0x58] sm:$0xf]
    %v198 = vld [vmem:[%s1 + $0x5c] sm:$0xf]
    %v199 = vld [vmem:[%s1 + $0x60] sm:$0xf]
    %v200 = vld [vmem:[%s1 + $0x64] sm:$0xf]
    %v201 = vld [vmem:[%s1 + $0x68] sm:$0xf]
    %v202 = vld [vmem:[%s1 + $0x6c] sm:$0xf]
    %v203 = vld [vmem:[%s1 + $0x70] sm:$0xf]
    %v204 = vld [vmem:[%s1 + $0x74] sm:$0xf]
    %v205 = vld [vmem:[%s1 + $0x78] sm:$0xf]
    %v206 = vld [vmem:[%s1 + $0x7c] sm:$0xf]
    %v207 = vld [vmem:[%s2] sm:$0x1]
    %v209 = vperm.slane %v207, 0
    %v243 = vunpack.c.l.b16 %v175
    %v244 = vunpack.c.l.b16 %v176
    %v245 = vunpack.c.l.b16 %v177
    %v246 = vunpack.c.l.b16 %v178
    %v247 = vunpack.c.l.b16 %v179
    %v248 = vunpack.c.l.b16 %v180
    %v249 = vunpack.c.l.b16 %v181
    %v250 = vunpack.c.l.b16 %v182
    %v251 = vunpack.c.l.b16 %v183
    %v252 = vunpack.c.l.b16 %v184
    %v253 = vunpack.c.l.b16 %v185
    %v254 = vunpack.c.l.b16 %v186
    %v255 = vunpack.c.l.b16 %v187
    %v256 = vunpack.c.l.b16 %v188
    %v257 = vunpack.c.l.b16 %v189
    %v258 = vunpack.c.l.b16 %v190
    %v259 = vunpack.c.l.b16 %v191
    %v260 = vunpack.c.l.b16 %v192
    %v261 = vunpack.c.l.b16 %v193
    %v262 = vunpack.c.l.b16 %v194
    %v263 = vunpack.c.l.b16 %v195
    %v264 = vunpack.c.l.b16 %v196
    %v265 = vunpack.c.l.b16 %v197
    %v266 = vunpack.c.l.b16 %v198
    %v267 = vunpack.c.l.b16 %v199
    %v268 = vunpack.c.l.b16 %v200
    %v269 = vunpack.c.l.b16 %v201
    %v270 = vunpack.c.l.b16 %v202
    %v271 = vunpack.c.l.b16 %v203
    %v272 = vunpack.c.l.b16 %v204
    %v273 = vunpack.c.l.b16 %v205
    %v274 = vunpack.c.l.b16 %v206
    %v275 = vpack.c.b16 %v244, %v243
    %v276 = vpack.c.b16 %v246, %v245
    %v277 = vpack.c.b16 %v248, %v247
    %v278 = vpack.c.b16 %v250, %v249
    %v279 = vpack.c.b16 %v252, %v251
    %v280 = vpack.c.b16 %v254, %v253
    %v281 = vpack.c.b16 %v256, %v255
    %v282 = vpack.c.b16 %v258, %v257
    %v283 = vpack.c.b16 %v260, %v259
    %v284 = vpack.c.b16 %v262, %v261
    %v285 = vpack.c.b16 %v264, %v263
    %v286 = vpack.c.b16 %v266, %v265
    %v287 = vpack.c.b16 %v268, %v267
    %v288 = vpack.c.b16 %v270, %v269
    %v289 = vpack.c.b16 %v272, %v271
    %v290 = vpack.c.b16 %v274, %v273
    %307 = vmatpush.bf16.msra.mxu0 %v282
    %308 = vmatpush.bf16.msra.mxu0 %v281
    %309 = vmatpush.bf16.msra.mxu0 %v280
    %310 = vmatpush.bf16.msra.mxu0 %v279
    %311 = vmatpush.bf16.msra.mxu0 %v278
    %312 = vmatpush.bf16.msra.mxu0 %v277
    %313 = vmatpush.bf16.msra.mxu0 %v276
    %314 = vmatpush.bf16.msra.mxu0 %v275
    %315 = vmatmul.bf16.gmra.mxu0 %v173
    %v316 = vpop.f32.mrf.mxu0
    %v317 = vadd.f32 %v209, %v316
    %v318 = vpop.f32.mrf.mxu0
    %v319 = vadd.f32 %v209, %v318
    %320 = vdwg.mxu0
    %321 = vmatpush.bf16.msra.mxu0 %v290
    %322 = vmatpush.bf16.msra.mxu0 %v289
    %323 = vmatpush.bf16.msra.mxu0 %v288
    %324 = vmatpush.bf16.msra.mxu0 %v287
    %325 = vmatpush.bf16.msra.mxu0 %v286
    %326 = vmatpush.bf16.msra.mxu0 %v285
    %327 = vmatpush.bf16.msra.mxu0 %v284
    %328 = vmatpush.bf16.msra.mxu0 %v283
    %329 = vmatmul.bf16.gmra.mxu0 %v174
    %v330 = vpop.f32.mrf.mxu0
    %v331 = vadd.f32 %v317, %v330
    %v332 = vpop.f32.mrf.mxu0
    %v333 = vadd.f32 %v319, %v332
    %334 = vdwg.mxu0
    %v335 = vmax.f32 %v331, 0.0
    %v336 = vmax.f32 %v333, 0.0
    %v337 = vld [vmem:[%s3] sm:$0xff]
    %v338 = vld [vmem:[%s3 + $0x8] sm:$0xff]
    %v339 = vmul.f32 %v335, %v337
    %v340 = vmul.f32 %v336, %v338
    %vm341 = vcmask 195584
    %v342 = vsel %vm341, %v339, -inf
    %v343 = vrot.slane %v342, 4
    %v344 = vmax.f32 %v342, %v343
    %v345 = vrot.slane %v344, 2
    %v346 = vmax.f32 %v344, %v345
    %v347 = vrot.slane %v346, 1
    %v348 = vmax.f32 %v346, %v347
    %v349 = vsel %vm341, %v340, -inf
    %v350 = vrot.slane %v349, 4
    %v351 = vmax.f32 %v349, %v350
    %v352 = vrot.slane %v351, 2
    %v353 = vmax.f32 %v351, %v352
    %v354 = vrot.slane %v353, 1
    %v355 = vmax.f32 %v353, %v354
    %vm356 = vcmask 1040384
    %v357 = vsel %vm356, %v348, %v355
    %v358 = vld [vmem:[%s4] sm:$0xff]
    %v359 = vld [vmem:[%s4 + $0x8] sm:$0xff]
    %v360 = vld [vmem:[%s4 + $0x10] sm:$0xff]
    %v361 = vld [vmem:[%s5] sm:$0x1]
    %v363 = vperm.slane %v361, 0
    %v366 = vsel %vm341, %v357, 0
    %368 = vmatpush.msra.mxu0 0.0
    %369 = vmatpush.msra.mxu0 0.0
    %370 = vmatpush.msra.mxu0 0.0
    %371 = vmatpush.msra.mxu0 0.0
    %372 = vmatpush.msra.mxu0 0.0
    %373 = vmatpush.msra.mxu0 0.0
    %374 = vmatpush.msra.mxu0 0.0
    %375 = vmatpush.msra.mxu0 0.0
    %376 = vmatpush.msra.mxu0 0.0
    %377 = vmatpush.msra.mxu0 0.0
    %378 = vmatpush.msra.mxu0 0.0
    %379 = vmatpush.msra.mxu0 0.0
    %380 = vmatpush.msra.mxu0 0.0
    %381 = vmatpush.msra.mxu0 %v360
    %382 = vmatpush.msra.mxu0 %v359
    %383 = vmatpush.msra.mxu0 %v358
    %384 = vmatmul.f32.gmra.mxu0 %v366
    %v385 = vpop.f32.mrf.mxu0
    %v386 = vadd.f32 %v363, %v385
    %387 = vdwg.mxu0
    %vm388 = vcmask 25600
    %389 = vst.msk [vmem:[#allocation2] sm:$0x3] %vm388, %v386
    // Predicated region
    $region26: #{basic_cnn_forward.1} parent=1 // pred_check
      _
    $region27: #{basic_cnn_forward.1} parent=1 // pred_check_branch
      %391 = sbr.rel (0) target = $region29
    $region28: #{basic_cnn_forward.1} parent=1 // pred_region
      %393 = vsyncadd [#allocation3], 0
      %s395 = sshll.u32 [#allocation2], 4
      %s396 = int_to_ptr.vmem [resolvable:$true] %s395
      %s397 = sshll.u32 %s6, 4
      %s398 = int_to_ptr.hbm [resolvable:$true] %s397
      %400 = dma.vmem_to_hbm [thread:$0]  %s396, 32, %s398, [#allocation3]
    $region29: #{basic_cnn_forward.1} parent=1 // pred_fallthru
      _
    // Predicated region
    $region30: #{basic_cnn_forward.1} parent=1 // pred_check
      _
    $region31: #{basic_cnn_forward.1} parent=1 // pred_check_branch
      %402 = sbr.rel (0) target = $region33
    $region32: #{basic_cnn_forward.1} parent=1 // pred_region
      %404 = dma.done [#allocation3], 32
    $region33: #{basic_cnn_forward.1} parent=1 // pred_fallthru
      _
    %405 = vsyncpa [#allocation3], 1

</llo_original>
